<compile_context>
chip_gen: v5e
topology: v5e:2x2
jax: 0.10.0
libtpu: 0.0.40
codegen_flags: <defaults>
</compile_context>

<pallas_src>
import functools

import jax
import jax.numpy as jnp
from jax.experimental import pallas as pl
from jax.experimental.pallas import tpu as pltpu


def _round_up(x: int, m: int) -> int:
    return (x + m - 1) // m * m


def _pick_block_batch(n: int) -> int:
    """Batch elements per grid step: amortize per-step overhead, but keep >= 2
    grid steps when possible so the parallel axis feeds both v7x TensorCores."""
    if n <= 1:
        return 1
    return max(1, min(8, n // 2))


# ----------------------------------------------------------------------------
# Debug-only probe for the pltpu.roll convention (review: keep behind a flag).
# ----------------------------------------------------------------------------
_VALIDATE_ROLL = False


def _check_roll_convention():
    def probe(o_ref):
        x = jax.lax.broadcasted_iota(jnp.float32, (8, 256), 1)  # 2 vregs wide
        o_ref[...] = pltpu.roll(x, shift=1, axis=1)

    out = pl.pallas_call(
        probe, out_shape=jax.ShapeDtypeStruct((8, 256), jnp.float32))()
    assert float(jax.device_get(out)[0, 1]) == 0.0, \
        "pltpu.roll does not follow the jnp.roll convention"


# ----------------------------------------------------------------------------
# Correlation kernel: zero-padded, unnormalized cross-correlation + per-step max
# ----------------------------------------------------------------------------
def _corr_kernel(srch_ref, ex_ref, mask_ref, corr_ref, max_ref,
                 *, H, W, h, w, K, NB):
    """srch_ref: (NB, Cp, H*W) f32 VMEM  -- channel planes, lane-dense
       ex_ref  : (Kp, Rp)      f32 VMEM  -- exemplar taps, cols ordered (dy,dx,c)
       mask_ref: (1, H*W)      f32 VMEM  -- grid-invariant F.pad border mask
       corr_ref: (NB, Kp, H*W) f32 VMEM  -- padded responses (unnormalized)
       max_ref : (NB, 8, 128)  f32 VMEM  -- per-batch max, broadcast to a tile
    """
    HW = H * W
    Cp = srch_ref.shape[1]
    Kp, Rp = ex_ref.shape
    ph, pw = h // 2, w // 2
    n_rows = h * w * Cp

    mask = mask_ref[...]                                      # (1, HW)
    row = jax.lax.broadcasted_iota(jnp.int32, (Kp, 1), 0)     # exclude padded K rows

    for b in range(NB):                      # short unrolled batch loop per step
        srch = srch_ref[b]                   # (Cp, HW), lane-dense

        # im2col via XLU lane rolls.  Padded output pixel l needs
        # srch[c, (l + s) % HW] with s = (dy - ph)*W + (dx - pw).  pltpu.roll
        # follows the jnp.roll convention (out[i] = x[(i - shift) % n]), so the
        # shift is -s.  Wrap-around only lands in the masked border.
        patches = []
        for dy in range(h):
            for dx in range(w):
                s = (dy - ph) * W + (dx - pw)
                sh = (-s) % HW
                patches.append(srch if sh == 0
                               else pltpu.roll(srch, shift=sh, axis=1))
        if Rp > n_rows:
            # Filler rows hit all-zero exemplar columns (kept, instead of an
            # unaligned contraction depth, for lowering safety).
            patches.append(jnp.zeros((Rp - n_rows, HW), jnp.float32))
        # TODO(synk): for large h*w*C (real SiamFC features) replace this
        # materialized (Rp, HW) im2col slab with 128/256-deep chunked tap
        # accumulation into a VMEM scratch (v7x 64 MiB VMEM / v5e store slot).
        patch_mat = jnp.concatenate(patches, axis=0)          # (Rp, HW)

        # Single MXU matmul -> all K (padded to Kp) response maps at once.
        resp = jnp.dot(ex_ref[...], patch_mat,
                       preferred_element_type=jnp.float32)    # (Kp, HW)

        # Zero the F.pad border (one vmul) and store lane/sublane-dense.
        masked = resp * mask
        corr_ref[b] = masked

        # Per-batch max of the real K maps (pad zeros included, exactly like
        # torch.max(F.pad(...))), broadcast into one (8,128) tile so the global
        # max becomes a reduce over N scalars instead of the full response.
        mb = jnp.max(jnp.where(row < K, masked, -jnp.inf))
        max_ref[b] = jnp.full((8, 128), mb, jnp.float32)


# ----------------------------------------------------------------------------
# Wrapper (jitted): layout plumbing + one pallas_call + fused XLA scale
# ----------------------------------------------------------------------------
@jax.jit
def siamese_forward(srch_window, exemplar):
    """Pallas implementation of SiameseNet.forward (NCHW in, NCHW out)."""
    N, C, H, W = srch_window.shape
    K, C2, h, w = exemplar.shape
    assert C == C2, "channel mismatch between search window and exemplar"
    assert h % 2 == 1 and w % 2 == 1, "exemplar spatial dims must be odd"
    HW = H * W
    ph, pw = h // 2, w // 2
    # Mirror the PyTorch assert: padded response spatial dims == input ones.
    assert ((H - h + 1) + 2 * ph, (W - w + 1) + 2 * pw) == (H, W), \
        "Something wrong happened in doing correlation!"

    NB = _pick_block_batch(N)
    Ng = pl.cdiv(N, NB)
    Np = Ng * NB
    Cp = _round_up(C, 8)               # channels    -> sublane multiple
    Kp = _round_up(K, 8)               # output maps -> sublane multiple
    Rp = _round_up(h * w * Cp, 128)    # im2col contraction -> lane multiple

    # ---- wrapper-side layout plumbing: lane-dense, (8,128)-aligned slabs ----
    srch_p = jnp.pad(srch_window.astype(jnp.float32),
                     ((0, Np - N), (0, Cp - C), (0, 0), (0, 0))).reshape(Np, Cp, HW)
    ex_t = jnp.pad(exemplar.astype(jnp.float32).transpose(0, 2, 3, 1),
                   ((0, Kp - K), (0, 0), (0, 0), (0, Cp - C)))
    ex_mat = jnp.pad(ex_t.reshape(Kp, h * w * Cp),
                     ((0, 0), (0, Rp - h * w * Cp)))

    # Grid-invariant F.pad border mask (1.0 inside the valid correlation area).
    yy = jnp.arange(H)[:, None]
    xx = jnp.arange(W)[None, :]
    valid = (yy >= ph) & (yy < H - ph) & (xx >= pw) & (xx < W - pw)
    mask = valid.astype(jnp.float32).reshape(1, HW)

    corr, maxes = pl.pallas_call(
        functools.partial(_corr_kernel, H=H, W=W, h=h, w=w, K=K, NB=NB),
        grid=(Ng,),
        in_specs=[
            pl.BlockSpec((NB, Cp, HW), lambda n: (n, 0, 0)),
            pl.BlockSpec((Kp, Rp), lambda n: (0, 0)),
            pl.BlockSpec((1, HW), lambda n: (0, 0)),
        ],
        out_specs=(
            pl.BlockSpec((NB, Kp, HW), lambda n: (n, 0, 0)),
            pl.BlockSpec((NB, 8, 128), lambda n: (n, 0, 0)),
        ),
        out_shape=(
            jax.ShapeDtypeStruct((Np, Kp, HW), jnp.float32),
            jax.ShapeDtypeStruct((Np, 8, 128), jnp.float32),
        ),
        compiler_params=pltpu.CompilerParams(
            dimension_semantics=("parallel",)),
    )(srch_p, ex_mat, mask)

    # Global max over real batches (each max tile is a broadcast scalar), then
    # one fused slice * scalar * reshape.  An all-zero max producing inf/nan is
    # inherited from the PyTorch reference.
    m = jnp.max(maxes[:N, 0, 0])
    inv = (1.0 / m).astype(jnp.float32)
    return (corr[:N, :K, :] * inv).reshape(N, K, H, W)


# ----------------------------------------------------------------------------
# Pure-JAX reference mirroring the PyTorch forward
# ----------------------------------------------------------------------------
def _reference(srch_window, exemplar):
    resp = jax.lax.conv_general_dilated(
        srch_window.astype(jnp.float32), exemplar.astype(jnp.float32),
        window_strides=(1, 1), padding="VALID",
        dimension_numbers=("NCHW", "OIHW", "NCHW"),
        precision=jax.lax.Precision.HIGHEST)
    ph, pw = exemplar.shape[2] // 2, exemplar.shape[3] // 2
    out = jnp.pad(resp, ((0, 0), (0, 0), (ph, ph), (pw, pw)))
    return out / jnp.max(out)


if __name__ == "__main__":
    if _VALIDATE_ROLL:
        _check_roll_convention()

    # Small shapes consistent with the module: exemplar spatial dims must be
    # odd so the padded response matches the search-window spatial size.
    N, C, H, W = 2, 4, 16, 16     # search window (NCHW)
    K, h, w = 2, 5, 5             # exemplar      (OIHW)

    key = jax.random.PRNGKey(0)
    k1, k2 = jax.random.split(key)
    srch_window = jax.random.normal(k1, (N, C, H, W), dtype=jnp.float32)
    exemplar = jax.random.normal(k2, (K, C, h, w), dtype=jnp.float32)

    out = jax.block_until_ready(siamese_forward(srch_window, exemplar))
    ref = jax.block_until_ready(_reference(srch_window, exemplar))

    assert out.shape == (N, K, H, W)
    # Loose enough to tolerate MXU f32 pass-count differences, tight enough to
    # catch any indexing / masking / layout bug.
    assert jnp.allclose(out, ref, rtol=5e-3, atol=5e-3), "mismatch vs reference"

    print("KERNEL_OK")
</pallas_src>

<mosaic_0001>
module attributes {stable_mosaic.version = 11 : i64} {
  func.func @_corr_kernel(%arg0: i32, %arg1: memref<1x8x256xf32, #tpu.memory_space<vmem>>, %arg2: memref<8x256xf32, #tpu.memory_space<vmem>>, %arg3: memref<1x256xf32, #tpu.memory_space<vmem>>, %arg4: memref<1x8x256xf32, #tpu.memory_space<vmem>>, %arg5: memref<1x8x128xf32, #tpu.memory_space<vmem>>) attributes {dimension_semantics = [#tpu.dimension_semantics<parallel>], iteration_bounds = array<i64: 2>, scalar_prefetch = 0 : i64, scratch_operands = 0 : i64, tpu.core_type = #tpu.core_type<tc>, window_params = [{transform_indices = @transform_0, window_bounds = array<i64: 1, 8, 256>}, {pipeline_mode = #tpu.pipeline_mode<synchronous>, transform_indices = @transform_1, window_bounds = array<i64: 8, 256>}, {pipeline_mode = #tpu.pipeline_mode<synchronous>, transform_indices = @transform_2, window_bounds = array<i64: 1, 256>}, {transform_indices = @transform_3, window_bounds = array<i64: 1, 8, 256>}, {transform_indices = @transform_4, window_bounds = array<i64: 1, 8, 128>}]} {
    %c0 = arith.constant 0 : index
    %c0_0 = arith.constant 0 : index
    %0 = vector.load %arg3[%c0, %c0_0] : memref<1x256xf32, #tpu.memory_space<vmem>>, vector<1x256xf32>
    %1 = tpu.iota {dimensions = array<i32: 0>} : vector<8x1xi32>
    %c0_1 = arith.constant 0 : index
    %c0_2 = arith.constant 0 : index
    %c0_3 = arith.constant 0 : index
    %2 = vector.load %arg1[%c0_1, %c0_2, %c0_3] : memref<1x8x256xf32, #tpu.memory_space<vmem>>, vector<1x8x256xf32>
    %3 = vector.shape_cast %2 : vector<1x8x256xf32> to vector<8x256xf32>
    %c34_i32 = arith.constant 34 : i32
    %4 = tpu.dynamic_rotate %3 by %c34_i32 dim 1 : vector<8x256xf32>, i32 -> vector<8x256xf32>
    %c33_i32 = arith.constant 33 : i32
    %5 = tpu.dynamic_rotate %3 by %c33_i32 dim 1 : vector<8x256xf32>, i32 -> vector<8x256xf32>
    %c32_i32 = arith.constant 32 : i32
    %6 = tpu.dynamic_rotate %3 by %c32_i32 dim 1 : vector<8x256xf32>, i32 -> vector<8x256xf32>
    %c31_i32 = arith.constant 31 : i32
    %7 = tpu.dynamic_rotate %3 by %c31_i32 dim 1 : vector<8x256xf32>, i32 -> vector<8x256xf32>
    %c30_i32 = arith.constant 30 : i32
    %8 = tpu.dynamic_rotate %3 by %c30_i32 dim 1 : vector<8x256xf32>, i32 -> vector<8x256xf32>
    %c18_i32 = arith.constant 18 : i32
    %9 = tpu.dynamic_rotate %3 by %c18_i32 dim 1 : vector<8x256xf32>, i32 -> vector<8x256xf32>
    %c17_i32 = arith.constant 17 : i32
    %10 = tpu.dynamic_rotate %3 by %c17_i32 dim 1 : vector<8x256xf32>, i32 -> vector<8x256xf32>
    %c16_i32 = arith.constant 16 : i32
    %11 = tpu.dynamic_rotate %3 by %c16_i32 dim 1 : vector<8x256xf32>, i32 -> vector<8x256xf32>
    %c15_i32 = arith.constant 15 : i32
    %12 = tpu.dynamic_rotate %3 by %c15_i32 dim 1 : vector<8x256xf32>, i32 -> vector<8x256xf32>
    %c14_i32 = arith.constant 14 : i32
    %13 = tpu.dynamic_rotate %3 by %c14_i32 dim 1 : vector<8x256xf32>, i32 -> vector<8x256xf32>
    %c2_i32 = arith.constant 2 : i32
    %14 = tpu.dynamic_rotate %3 by %c2_i32 dim 1 : vector<8x256xf32>, i32 -> vector<8x256xf32>
    %c1_i32 = arith.constant 1 : i32
    %15 = tpu.dynamic_rotate %3 by %c1_i32 dim 1 : vector<8x256xf32>, i32 -> vector<8x256xf32>
    %c255_i32 = arith.constant 255 : i32
    %16 = tpu.dynamic_rotate %3 by %c255_i32 dim 1 : vector<8x256xf32>, i32 -> vector<8x256xf32>
    %c254_i32 = arith.constant 254 : i32
    %17 = tpu.dynamic_rotate %3 by %c254_i32 dim 1 : vector<8x256xf32>, i32 -> vector<8x256xf32>
    %c242_i32 = arith.constant 242 : i32
    %18 = tpu.dynamic_rotate %3 by %c242_i32 dim 1 : vector<8x256xf32>, i32 -> vector<8x256xf32>
    %c241_i32 = arith.constant 241 : i32
    %19 = tpu.dynamic_rotate %3 by %c241_i32 dim 1 : vector<8x256xf32>, i32 -> vector<8x256xf32>
    %c240_i32 = arith.constant 240 : i32
    %20 = tpu.dynamic_rotate %3 by %c240_i32 dim 1 : vector<8x256xf32>, i32 -> vector<8x256xf32>
    %c239_i32 = arith.constant 239 : i32
    %21 = tpu.dynamic_rotate %3 by %c239_i32 dim 1 : vector<8x256xf32>, i32 -> vector<8x256xf32>
    %c238_i32 = arith.constant 238 : i32
    %22 = tpu.dynamic_rotate %3 by %c238_i32 dim 1 : vector<8x256xf32>, i32 -> vector<8x256xf32>
    %c226_i32 = arith.constant 226 : i32
    %23 = tpu.dynamic_rotate %3 by %c226_i32 dim 1 : vector<8x256xf32>, i32 -> vector<8x256xf32>
    %c225_i32 = arith.constant 225 : i32
    %24 = tpu.dynamic_rotate %3 by %c225_i32 dim 1 : vector<8x256xf32>, i32 -> vector<8x256xf32>
    %c224_i32 = arith.constant 224 : i32
    %25 = tpu.dynamic_rotate %3 by %c224_i32 dim 1 : vector<8x256xf32>, i32 -> vector<8x256xf32>
    %c223_i32 = arith.constant 223 : i32
    %26 = tpu.dynamic_rotate %3 by %c223_i32 dim 1 : vector<8x256xf32>, i32 -> vector<8x256xf32>
    %c222_i32 = arith.constant 222 : i32
    %27 = tpu.dynamic_rotate %3 by %c222_i32 dim 1 : vector<8x256xf32>, i32 -> vector<8x256xf32>
    %cst = arith.constant 0.000000e+00 : f32
    %28 = vector.broadcast %cst : f32 to vector<56x256xf32>
    %29 = tpu.concatenate %4, %5, %6, %7, %8, %9, %10, %11, %12, %13, %14, %15, %3, %16, %17, %18 in 0 : vector<8x256xf32>, vector<8x256xf32>, vector<8x256xf32>, vector<8x256xf32>, vector<8x256xf32>, vector<8x256xf32>, vector<8x256xf32>, vector<8x256xf32>, vector<8x256xf32>, vector<8x256xf32>, vector<8x256xf32>, vector<8x256xf32>, vector<8x256xf32>, vector<8x256xf32>, vector<8x256xf32>, vector<8x256xf32> -> vector<128x256xf32>
    %30 = tpu.concatenate %19, %20, %21, %22, %23, %24, %25, %26, %27, %28 in 0 : vector<8x256xf32>, vector<8x256xf32>, vector<8x256xf32>, vector<8x256xf32>, vector<8x256xf32>, vector<8x256xf32>, vector<8x256xf32>, vector<8x256xf32>, vector<8x256xf32>, vector<56x256xf32> -> vector<128x256xf32>
    %31 = tpu.concatenate %29, %30 in 0 : vector<128x256xf32>, vector<128x256xf32> -> vector<256x256xf32>
    %c0_4 = arith.constant 0 : index
    %c0_5 = arith.constant 0 : index
    %32 = vector.load %arg2[%c0_4, %c0_5] : memref<8x256xf32, #tpu.memory_space<vmem>>, vector<8x256xf32>
    %cst_6 = arith.constant dense<0.000000e+00> : vector<8x256xf32>
    %33 = tpu.matmul %32, %31, %cst_6 {dimension_numbers = #tpu.dot_dimension_numbers<[1], [0], [0], [1], [0, 0, 1, 1], [], []>} : vector<8x256xf32>, vector<256x256xf32>, vector<8x256xf32> -> vector<8x256xf32>
    %34 = vector.broadcast %0 : vector<1x256xf32> to vector<8x256xf32>
    %35 = arith.mulf %33, %34 : vector<8x256xf32>
    %c0_7 = arith.constant 0 : index
    %c0_8 = arith.constant 0 : index
    %c0_9 = arith.constant 0 : index
    %36 = vector.load %arg4[%c0_7, %c0_8, %c0_9] : memref<1x8x256xf32, #tpu.memory_space<vmem>>, vector<1x8x256xf32>
    %37 = vector.shape_cast %36 : vector<1x8x256xf32> to vector<8x256xf32>
    %38 = vector.shape_cast %35 : vector<8x256xf32> to vector<1x8x256xf32>
    tpu.vector_store %arg4[%c0_7, %c0_8, %c0_9], %38 {strides = array<i32>} : memref<1x8x256xf32, #tpu.memory_space<vmem>>, vector<1x8x256xf32>,
    %c2_i32_10 = arith.constant 2 : i32
    %39 = vector.broadcast %c2_i32_10 : i32 to vector<8x1xi32>
    %40 = arith.cmpi slt, %1, %39 : vector<8x1xi32>
    %cst_11 = arith.constant 0xFF800000 : f32
    %41 = vector.shape_cast %40 : vector<8x1xi1> to vector<8x1xi1>
    %42 = vector.broadcast %41 : vector<8x1xi1> to vector<8x256xi1>
    %43 = vector.broadcast %cst_11 : f32 to vector<8x256xf32>
    %44 = arith.select %42, %35, %43 : vector<8x256xi1>, vector<8x256xf32>
    %45 = vector.shape_cast %44 : vector<8x256xf32> to vector<1x8x256xf32>
    %cst_12 = arith.constant dense<0xFF800000> : vector<1xf32>
    %46 = vector.multi_reduction <maximumf>, %45, %cst_12 [1, 2] : vector<1x8x256xf32> to vector<1xf32>
    %47 = vector.shape_cast %46 : vector<1xf32> to vector<1x1x1xf32>
    %48 = vector.extract %47[0, 0, 0] : f32 from vector<1x1x1xf32>
    %49 = vector.broadcast %48 : f32 to vector<8x128xf32>
    %c0_13 = arith.constant 0 : index
    %c0_14 = arith.constant 0 : index
    %c0_15 = arith.constant 0 : index
    %50 = vector.load %arg5[%c0_13, %c0_14, %c0_15] : memref<1x8x128xf32, #tpu.memory_space<vmem>>, vector<1x8x128xf32>
    %51 = vector.shape_cast %50 : vector<1x8x128xf32> to vector<8x128xf32>
    %52 = vector.shape_cast %49 : vector<8x128xf32> to vector<1x8x128xf32>
    tpu.vector_store %arg5[%c0_13, %c0_14, %c0_15], %52 {strides = array<i32>} : memref<1x8x128xf32, #tpu.memory_space<vmem>>, vector<1x8x128xf32>,
    return
  }
  func.func @transform_0(%arg0: i32) -> (i32, i32, i32) {
    %c0_i32 = arith.constant 0 : i32
    %c0_i32_0 = arith.constant 0 : i32
    %c0_i32_1 = arith.constant 0 : i32
    return %arg0, %c0_i32, %c0_i32_0 : i32, i32, i32
  }
  func.func @transform_1(%arg0: i32) -> (i32, i32) {
    %c0_i32 = arith.constant 0 : i32
    %c0_i32_0 = arith.constant 0 : i32
    %c0_i32_1 = arith.constant 0 : i32
    return %c0_i32, %c0_i32_0 : i32, i32
  }
  func.func @transform_2(%arg0: i32) -> (i32, i32) {
    %c0_i32 = arith.constant 0 : i32
    %c0_i32_0 = arith.constant 0 : i32
    %c0_i32_1 = arith.constant 0 : i32
    return %c0_i32, %c0_i32_0 : i32, i32
  }
  func.func @transform_3(%arg0: i32) -> (i32, i32, i32) {
    %c0_i32 = arith.constant 0 : i32
    %c0_i32_0 = arith.constant 0 : i32
    %c0_i32_1 = arith.constant 0 : i32
    return %arg0, %c0_i32, %c0_i32_0 : i32, i32, i32
  }
  func.func @transform_4(%arg0: i32) -> (i32, i32, i32) {
    %c0_i32 = arith.constant 0 : i32
    %c0_i32_0 = arith.constant 0 : i32
    %c0_i32_1 = arith.constant 0 : i32
    return %arg0, %c0_i32, %c0_i32_0 : i32, i32, i32
  }
}

</mosaic_0001>

<llo_original>
// kernel: siamese_forward.1
$region0: #{siamese_forward.1}
  #allocation0 [shape = 'u32[]', space=smem, size = 0x4, offset = 0x4, fixed_abs, tag = 'smem constant byte address 0x4 - core index']
  #allocation1 [shape = 'u32[72,128]{1,0:T(1,128)}', space=vmem, size = 0x9000, scoped, tag = 'internal scratch']
  %s0 = inlined_call_operand.vmem [shape: f32[2,8,256], index: 0, kind: input, shape index: {}]
  %s1 = inlined_call_operand.vmem [shape: f32[8,256], index: 1, kind: input, shape index: {}]
  %s2 = inlined_call_operand.vmem [shape: f32[1,256], index: 2, kind: input, shape index: {}]
  %s3 = inlined_call_operand.vmem [shape: f32[2,8,256], index: 3, kind: output, shape index: {0}]
  %s4 = inlined_call_operand.vmem [shape: f32[2,8,128], index: 4, kind: output, shape index: {1}]
  %5 = xla_tuple %s3, %s4
  %s6 = sld [smem:[#allocation0]]
  $region53: #{siamese_forward.1} parent=0
    _
  %s8 = ssub.s32 1, %s6
  %s9 = scalar_select 0, %s8, %s6
  loop: start=0, step=1, limit=4
  $region2: #{siamese_forward.1} parent=0 // loop_pre_header
    _
  $region3: #{siamese_forward.1} parent=0 // loop_header
    %s11 = sphi 0, %s15
    %p12 = scmp.ge.s32.totalorder %s11, 4
    %s21 = sphi 0, %s23
    %s24 = sphi 0, %s21
    %s25 = sphi 0, %s24
    %s41 = sphi 0, %s25
    %s45 = sphi 0, %s45
    %s47 = sphi 0, %s45
    %s48 = sphi 0, %s47
    %s62 = sphi 0, %s48
    %s66 = sphi 0, %s66
    %s68 = sphi 0, %s66
    %s69 = sphi 0, %s68
    %s83 = sphi 0, %s69
    %s89 = sphi 0, %s91
    %s92 = sphi 0, %s89
    %s93 = sphi 0, %s92
    %s109 = sphi 0, %s93
    %s115 = sphi 0, %s117
    %s118 = sphi 0, %s115
    %s119 = sphi 0, %s118
    %s135 = sphi 0, %s119
  $region4: #{siamese_forward.1} parent=0 // loop_header_branch
    %14 = sbr.rel (%p12) target = $region8
  $region5: #{siamese_forward.1} parent=0 // loop_body
    %s16 = ssub.s32 %s11, 1
    %s17 = ssub.s32 %s11, 2
    %s18 = sadd.s32 %s11, 1
    %s19 = ssub.s32 %s11, %s18
    %p20 = scmp.eq.s32.totalorder %s19, 0
    %s22 = sadd.s32 %s21, 1
    %s23 = scalar_select %p20, %s21, %s22
    %p26 = pneg %p20
    %p27 = scmp.eq.s32.totalorder %s11, 1
    %p28 = por %p26, %p27
    %p29 = scmp.ne.s32.totalorder %s21, %s24
    %p30 = scmp.eq.s32.totalorder %s11, 0
    %p31 = por %p29, %p30
    %p32 = scmp.ne.s32.totalorder %s21, %s24
    %p33 = scmp.eq.s32.totalorder %s16, 1
    %p34 = por %p32, %p33
    %p35 = scmp.ne.s32.totalorder %s24, %s25
    %p36 = scmp.eq.s32.totalorder %s16, 0
    %p37 = por %p35, %p36
    %p38 = scmp.ne.s32.totalorder %s24, %s25
    %p39 = scmp.eq.s32.totalorder %s17, 1
    %p40 = por %p38, %p39
    %p42 = scmp.ne.s32.totalorder %s25, %s41
    %p43 = scmp.eq.s32.totalorder %s17, 0
    %p44 = por %p42, %p43
    %s46 = sadd.s32 %s45, 1
    %p49 = scmp.eq.s32.totalorder %s11, 1
    %p50 = scmp.ne.s32.totalorder %s45, %s47
    %p51 = scmp.eq.s32.totalorder %s11, 0
    %p52 = por %p50, %p51
    %p53 = scmp.ne.s32.totalorder %s45, %s47
    %p54 = scmp.eq.s32.totalorder %s16, 1
    %p55 = por %p53, %p54
    %p56 = scmp.ne.s32.totalorder %s47, %s48
    %p57 = scmp.eq.s32.totalorder %s16, 0
    %p58 = por %p56, %p57
    %p59 = scmp.ne.s32.totalorder %s47, %s48
    %p60 = scmp.eq.s32.totalorder %s17, 1
    %p61 = por %p59, %p60
    %p63 = scmp.ne.s32.totalorder %s48, %s62
    %p64 = scmp.eq.s32.totalorder %s17, 0
    %p65 = por %p63, %p64
    %s67 = sadd.s32 %s66, 1
    %p70 = scmp.eq.s32.totalorder %s11, 1
    %p71 = scmp.ne.s32.totalorder %s66, %s68
    %p72 = scmp.eq.s32.totalorder %s11, 0
    %p73 = por %p71, %p72
    %p74 = scmp.ne.s32.totalorder %s66, %s68
    %p75 = scmp.eq.s32.totalorder %s16, 1
    %p76 = por %p74, %p75
    %p77 = scmp.ne.s32.totalorder %s68, %s69
    %p78 = scmp.eq.s32.totalorder %s16, 0
    %p79 = por %p77, %p78
    %p80 = scmp.ne.s32.totalorder %s68, %s69
    %p81 = scmp.eq.s32.totalorder %s17, 1
    %p82 = por %p80, %p81
    %p84 = scmp.ne.s32.totalorder %s69, %s83
    %p85 = scmp.eq.s32.totalorder %s17, 0
    %p86 = por %p84, %p85
    %s87 = ssub.s32 %s11, %s18
    %p88 = scmp.eq.s32.totalorder %s87, 0
    %s90 = sadd.s32 %s89, 1
    %s91 = scalar_select %p88, %s89, %s90
    %p94 = pneg %p88
    %p95 = scmp.eq.s32.totalorder %s11, 1
    %p96 = por %p94, %p95
    %p97 = scmp.ne.s32.totalorder %s89, %s92
    %p98 = scmp.eq.s32.totalorder %s11, 0
    %p99 = por %p97, %p98
    %p100 = scmp.ne.s32.totalorder %s89, %s92
    %p101 = scmp.eq.s32.totalorder %s16, 1
    %p102 = por %p100, %p101
    %p103 = scmp.ne.s32.totalorder %s92, %s93
    %p104 = scmp.eq.s32.totalorder %s16, 0
    %p105 = por %p103, %p104
    %p106 = scmp.ne.s32.totalorder %s92, %s93
    %p107 = scmp.eq.s32.totalorder %s17, 1
    %p108 = por %p106, %p107
    %p110 = scmp.ne.s32.totalorder %s93, %s109
    %p111 = scmp.eq.s32.totalorder %s17, 0
    %p112 = por %p110, %p111
    %s113 = ssub.s32 %s11, %s18
    %p114 = scmp.eq.s32.totalorder %s113, 0
    %s116 = sadd.s32 %s115, 1
    %s117 = scalar_select %p114, %s115, %s116
    %p120 = pneg %p114
    %p121 = scmp.eq.s32.totalorder %s11, 1
    %p122 = por %p120, %p121
    %p123 = scmp.ne.s32.totalorder %s115, %s118
    %p124 = scmp.eq.s32.totalorder %s11, 0
    %p125 = por %p123, %p124
    %p126 = scmp.ne.s32.totalorder %s115, %s118
    %p127 = scmp.eq.s32.totalorder %s16, 1
    %p128 = por %p126, %p127
    %p129 = scmp.ne.s32.totalorder %s118, %s119
    %p130 = scmp.eq.s32.totalorder %s16, 0
    %p131 = por %p129, %p130
    %p132 = scmp.ne.s32.totalorder %s118, %s119
    %p133 = scmp.eq.s32.totalorder %s17, 1
    %p134 = por %p132, %p133
    %p136 = scmp.ne.s32.totalorder %s119, %s135
    %p137 = scmp.eq.s32.totalorder %s17, 0
    %p138 = por %p136, %p137
    %p139 = scmp.le.s32.totalorder 1, %s11
    %p140 = scmp.lt.s32.totalorder %s11, 3
    %p141 = pnand %p139, %p140
    %p142 = pneg %p141
    // Predicated region
    $region9: #{siamese_forward.1} parent=5 // pred_check
      _
    $region10: #{siamese_forward.1} parent=5 // pred_check_branch
      %144 = sbr.rel (%p141) target = $region12
    $region11: #{siamese_forward.1} parent=5 // pred_region
      %s145 = ssub.s32 %s11, 1
      // Predicated region
      $region13: #{siamese_forward.1} parent=11 // pred_check
        %p146 = pneg %p58
      $region14: #{siamese_forward.1} parent=11 // pred_check_branch
        %148 = sbr.rel (%p146) target = $region16
      $region15: #{siamese_forward.1} parent=11 // pred_region
        _
      $region16: #{siamese_forward.1} parent=11 // pred_fallthru
        _
      // Predicated region
      $region17: #{siamese_forward.1} parent=11 // pred_check
        %p149 = pneg %p79
      $region18: #{siamese_forward.1} parent=11 // pred_check_branch
        %151 = sbr.rel (%p149) target = $region20
      $region19: #{siamese_forward.1} parent=11 // pred_region
        _
      $region20: #{siamese_forward.1} parent=11 // pred_fallthru
        _
    $region12: #{siamese_forward.1} parent=5 // pred_fallthru
      _
    %p152 = scmp.lt.s32.totalorder %s11, 2
    // Predicated region
    $region21: #{siamese_forward.1} parent=5 // pred_check
      %p153 = pneg %p152
    $region22: #{siamese_forward.1} parent=5 // pred_check_branch
      %155 = sbr.rel (%p153) target = $region24
    $region23: #{siamese_forward.1} parent=5 // pred_region
      // Predicated region
      $region25: #{siamese_forward.1} parent=23 // pred_check
        %p156 = pneg %p31
      $region26: #{siamese_forward.1} parent=23 // pred_check_branch
        %158 = sbr.rel (%p156) target = $region28
      $region27: #{siamese_forward.1} parent=23 // pred_region
        %p159 = scmp.lt.s32.totalorder %s11, 1
        %s160 = scalar_select %p159, %s11, 1
        %s161 = smul.addr %s160, 2
        %s162 = smul.addr %s161, 8
        %s163 = scalar_lea.vmem %s0, %s162
      $region28: #{siamese_forward.1} parent=23 // pred_fallthru
        _
    $region24: #{siamese_forward.1} parent=5 // pred_fallthru
      _
    %p164 = scmp.le.s32.totalorder 1, %s11
    %p165 = scmp.lt.s32.totalorder %s11, 3
    %p166 = pnand %p164, %p165
    %p167 = pneg %p166
    // Predicated region
    $region29: #{siamese_forward.1} parent=5 // pred_check
      _
    $region30: #{siamese_forward.1} parent=5 // pred_check_branch
      %169 = sbr.rel (%p166) target = $region32
    $region31: #{siamese_forward.1} parent=5 // pred_region
      %s170 = ssub.s32 %s11, 1
      %p171 = scmp.lt.s32.totalorder %s16, 1
      %s172 = scalar_select %p171, %s16, 1
      %s173 = smul.addr %s172, 2
      %s174 = smul.addr %s173, 8
      %s175 = scalar_lea.vmem %s0, %s174
      %p176 = pneg %p37
      %p177 = pneg %p34
      %p178 = pneg %p58
      %p179 = pneg %p55
      %p180 = pneg %p79
      %p181 = pneg %p76
      %p182 = pneg %p105
      %p183 = pneg %p102
      %p184 = scmp.lt.s32.totalorder %s16, 1
      %s185 = scalar_select %p184, %s16, 1
      %s186 = smul.addr %s185, 2
      %s187 = smul.addr %s186, 8
      %s188 = scalar_lea.vmem %s3, %s187
      %p189 = pneg %p131
      %p190 = pneg %p128
      %p191 = scmp.lt.s32.totalorder %s16, 1
      %s192 = scalar_select %p191, %s16, 1
      %s193 = smul.addr %s192, 8
      %s194 = scalar_lea.vmem %s4, %s193
      %p195 = scmp.lt.s32.totalorder %s16, 1
      %s196 = scalar_select %p195, %s16, 1
      %s197 = smul.addr %s196, 2
      %s198 = smul.addr %s197, 8
      %s199 = scalar_lea.vmem %s0, %s198
      %p200 = scmp.lt.s32.totalorder %s16, 1
      %s201 = scalar_select %p200, %s16, 1
      %s202 = smul.addr %s201, 2
      %s203 = smul.addr %s202, 8
      %s204 = scalar_lea.vmem %s3, %s203
      %p205 = scmp.lt.s32.totalorder %s16, 1
      %s206 = scalar_select %p205, %s16, 1
      %s207 = smul.addr %s206, 8
      %s208 = scalar_lea.vmem %s4, %s207
      %v209 = vld [vmem:[%s2] sm:$0x3]
      %v210 = vlaneseq
      %v211 = vshrl.u32 %v210, 7
      %v212 = vld [vmem:[%s199] sm:$0xff]
      %v213 = vld [vmem:[%s199 + $0x8] sm:$0xff]
      %214 = vrot.lane.b32.xlu0 %v212, 34
      %v215 = vpop.permute.xlu0 %214
      %216 = vrot.lane.b32.xlu0 %v213, 34
      %v217 = vpop.permute.xlu0 %216
      %v218 = vlaneseq
      %v219 = vand.u32 %v218, 127
      %vm220 = vcmp.lt.s32.totalorder %v219, 34
      %v221 = vsel %vm220, %v215, %v217
      %v222 = vsel %vm220, %v217, %v215
      %223 = vrot.lane.b32.xlu0 %v212, 33
      %v224 = vpop.permute.xlu0 %223
      %225 = vrot.lane.b32.xlu0 %v213, 33
      %v226 = vpop.permute.xlu0 %225
      %vm227 = vcmp.lt.s32.totalorder %v219, 33
      %v228 = vsel %vm227, %v224, %v226
      %v229 = vsel %vm227, %v226, %v224
      %230 = vrot.lane.b32.xlu0 %v212, 32
      %v231 = vpop.permute.xlu0 %230
      %232 = vrot.lane.b32.xlu0 %v213, 32
      %v233 = vpop.permute.xlu0 %232
      %vm234 = vcmp.lt.s32.totalorder %v219, 32
      %v235 = vsel %vm234, %v231, %v233
      %v236 = vsel %vm234, %v233, %v231
      %237 = vrot.lane.b32.xlu0 %v212, 31
      %v238 = vpop.permute.xlu0 %237
      %239 = vrot.lane.b32.xlu0 %v213, 31
      %v240 = vpop.permute.xlu0 %239
      %vm241 = vcmp.lt.s32.totalorder %v219, 31
      %v242 = vsel %vm241, %v238, %v240
      %v243 = vsel %vm241, %v240, %v238
      %244 = vrot.lane.b32.xlu0 %v212, 30
      %v245 = vpop.permute.xlu0 %244
      %246 = vrot.lane.b32.xlu0 %v213, 30
      %v247 = vpop.permute.xlu0 %246
      %vm248 = vcmp.lt.s32.totalorder %v219, 30
      %v249 = vsel %vm248, %v245, %v247
      %v250 = vsel %vm248, %v247, %v245
      %251 = vrot.lane.b32.xlu0 %v212, 18
      %v252 = vpop.permute.xlu0 %251
      %253 = vrot.lane.b32.xlu0 %v213, 18
      %v254 = vpop.permute.xlu0 %253
      %vm255 = vcmp.lt.s32.totalorder %v219, 18
      %v256 = vsel %vm255, %v252, %v254
      %v257 = vsel %vm255, %v254, %v252
      %258 = vrot.lane.b32.xlu0 %v212, 17
      %v259 = vpop.permute.xlu0 %258
      %260 = vrot.lane.b32.xlu0 %v213, 17
      %v261 = vpop.permute.xlu0 %260
      %vm262 = vcmp.lt.s32.totalorder %v219, 17
      %v263 = vsel %vm262, %v259, %v261
      %v264 = vsel %vm262, %v261, %v259
      %265 = vrot.lane.b32.xlu0 %v212, 16
      %v266 = vpop.permute.xlu0 %265
      %267 = vrot.lane.b32.xlu0 %v213, 16
      %v268 = vpop.permute.xlu0 %267
      %vm269 = vcmp.lt.s32.totalorder %v219, 16
      %v270 = vsel %vm269, %v266, %v268
      %v271 = vsel %vm269, %v268, %v266
      %272 = vrot.lane.b32.xlu0 %v212, 15
      %v273 = vpop.permute.xlu0 %272
      %274 = vrot.lane.b32.xlu0 %v213, 15
      %v275 = vpop.permute.xlu0 %274
      %vm276 = vcmp.lt.s32.totalorder %v219, 15
      %v277 = vsel %vm276, %v273, %v275
      %v278 = vsel %vm276, %v275, %v273
      %279 = vrot.lane.b32.xlu0 %v212, 14
      %v280 = vpop.permute.xlu0 %279
      %281 = vrot.lane.b32.xlu0 %v213, 14
      %v282 = vpop.permute.xlu0 %281
      %vm283 = vcmp.lt.s32.totalorder %v219, 14
      %v284 = vsel %vm283, %v280, %v282
      %v285 = vsel %vm283, %v282, %v280
      %286 = vrot.lane.b32.xlu0 %v212, 2
      %v287 = vpop.permute.xlu0 %286
      %288 = vrot.lane.b32.xlu0 %v213, 2
      %v289 = vpop.permute.xlu0 %288
      %vm290 = vcmp.lt.s32.totalorder %v219, 2
      %v291 = vsel %vm290, %v287, %v289
      %v292 = vsel %vm290, %v289, %v287
      %293 = vrot.lane.b32.xlu0 %v212, 1
      %v294 = vpop.permute.xlu0 %293
      %295 = vrot.lane.b32.xlu0 %v213, 1
      %v296 = vpop.permute.xlu0 %295
      %vm297 = vcmp.lt.s32.totalorder %v219, 1
      %v298 = vsel %vm297, %v294, %v296
      %v299 = vsel %vm297, %v296, %v294
      %300 = vrot.lane.b32.xlu0 %v212, 127
      %v301 = vpop.permute.xlu0 %300
      %302 = vrot.lane.b32.xlu0 %v213, 127
      %v303 = vpop.permute.xlu0 %302
      %vm304 = vcmp.lt.s32.totalorder %v219, 127
      %v305 = vsel %vm304, %v301, %v303
      %v306 = vsel %vm304, %v303, %v301
      %307 = vrot.lane.b32.xlu0 %v212, 126
      %v308 = vpop.permute.xlu0 %307
      %309 = vrot.lane.b32.xlu0 %v213, 126
      %v310 = vpop.permute.xlu0 %309
      %vm311 = vcmp.lt.s32.totalorder %v219, 126
      %v312 = vsel %vm311, %v308, %v310
      %v313 = vsel %vm311, %v310, %v308
      %314 = vrot.lane.b32.xlu0 %v212, 114
      %v315 = vpop.permute.xlu0 %314
      %316 = vrot.lane.b32.xlu0 %v213, 114
      %v317 = vpop.permute.xlu0 %316
      %vm318 = vcmp.lt.s32.totalorder %v219, 114
      %v319 = vsel %vm318, %v315, %v317
      %v320 = vsel %vm318, %v317, %v315
      %321 = vrot.lane.b32.xlu0 %v212, 113
      %v322 = vpop.permute.xlu0 %321
      %323 = vrot.lane.b32.xlu0 %v213, 113
      %v324 = vpop.permute.xlu0 %323
      %vm325 = vcmp.lt.s32.totalorder %v219, 113
      %v326 = vsel %vm325, %v322, %v324
      %v327 = vsel %vm325, %v324, %v322
      %328 = vrot.lane.b32.xlu0 %v212, 112
      %v329 = vpop.permute.xlu0 %328
      %330 = vrot.lane.b32.xlu0 %v213, 112
      %v331 = vpop.permute.xlu0 %330
      %vm332 = vcmp.lt.s32.totalorder %v219, 112
      %v333 = vsel %vm332, %v329, %v331
      %v334 = vsel %vm332, %v331, %v329
      %335 = vrot.lane.b32.xlu0 %v212, 111
      %v336 = vpop.permute.xlu0 %335
      %337 = vrot.lane.b32.xlu0 %v213, 111
      %v338 = vpop.permute.xlu0 %337
      %vm339 = vcmp.lt.s32.totalorder %v219, 111
      %v340 = vsel %vm339, %v336, %v338
      %v341 = vsel %vm339, %v338, %v336
      %342 = vrot.lane.b32.xlu0 %v212, 110
      %v343 = vpop.permute.xlu0 %342
      %344 = vrot.lane.b32.xlu0 %v213, 110
      %v345 = vpop.permute.xlu0 %344
      %vm346 = vcmp.lt.s32.totalorder %v219, 110
      %v347 = vsel %vm346, %v343, %v345
      %v348 = vsel %vm346, %v345, %v343
      %349 = vrot.lane.b32.xlu0 %v212, 98
      %v350 = vpop.permute.xlu0 %349
      %351 = vrot.lane.b32.xlu0 %v213, 98
      %v352 = vpop.permute.xlu0 %351
      %vm353 = vcmp.lt.s32.totalorder %v219, 98
      %v354 = vsel %vm353, %v350, %v352
      %v355 = vsel %vm353, %v352, %v350
      %356 = vrot.lane.b32.xlu0 %v212, 97
      %v357 = vpop.permute.xlu0 %356
      %358 = vrot.lane.b32.xlu0 %v213, 97
      %v359 = vpop.permute.xlu0 %358
      %vm360 = vcmp.lt.s32.totalorder %v219, 97
      %v361 = vsel %vm360, %v357, %v359
      %v362 = vsel %vm360, %v359, %v357
      %363 = vrot.lane.b32.xlu0 %v212, 96
      %v364 = vpop.permute.xlu0 %363
      %365 = vrot.lane.b32.xlu0 %v213, 96
      %v366 = vpop.permute.xlu0 %365
      %vm367 = vcmp.lt.s32.totalorder %v219, 96
      %v368 = vsel %vm367, %v364, %v366
      %v369 = vsel %vm367, %v366, %v364
      %370 = vrot.lane.b32.xlu0 %v212, 95
      %v371 = vpop.permute.xlu0 %370
      %372 = vrot.lane.b32.xlu0 %v213, 95
      %v373 = vpop.permute.xlu0 %372
      %vm374 = vcmp.lt.s32.totalorder %v219, 95
      %v375 = vsel %vm374, %v371, %v373
      %v376 = vsel %vm374, %v373, %v371
      %377 = vrot.lane.b32.xlu0 %v212, 94
      %v378 = vpop.permute.xlu0 %377
      %379 = vrot.lane.b32.xlu0 %v213, 94
      %v380 = vpop.permute.xlu0 %379
      %vm381 = vcmp.lt.s32.totalorder %v219, 94
      %v382 = vsel %vm381, %v378, %v380
      %v383 = vsel %vm381, %v380, %v378
      %v384 = vld [vmem:[%s1] sm:$0xff]
      %v385 = vld [vmem:[%s1 + $0x8] sm:$0xff]
      %386 = vmatpush.msra.mxu0 %v319
      %387 = vmatpush.msra.mxu0 %v312
      %388 = vmatpush.msra.mxu0 %v305
      %389 = vmatpush.msra.mxu0 %v212
      %390 = vmatpush.msra.mxu0 %v299
      %391 = vmatpush.msra.mxu0 %v292
      %392 = vmatpush.msra.mxu0 %v285
      %393 = vmatpush.msra.mxu0 %v278
      %394 = vmatpush.msra.mxu0 %v271
      %395 = vmatpush.msra.mxu0 %v264
      %396 = vmatpush.msra.mxu0 %v257
      %397 = vmatpush.msra.mxu0 %v250
      %398 = vmatpush.msra.mxu0 %v243
      %399 = vmatpush.msra.mxu0 %v236
      %400 = vmatpush.msra.mxu0 %v229
      %401 = vmatpush.msra.mxu0 %v222
      %402 = vmatmul.f32.gmra.mxu0 %v384
      %v403 = vpop.f32.mrf.mxu0
      %v404 = vadd.f32 0.0, %v403
      %405 = vdwg.mxu0
      %406 = vmatpush.msra.mxu0 0.0
      %407 = vmatpush.msra.mxu0 0.0
      %408 = vmatpush.msra.mxu0 0.0
      %409 = vmatpush.msra.mxu0 0.0
      %410 = vmatpush.msra.mxu0 0.0
      %411 = vmatpush.msra.mxu0 0.0
      %412 = vmatpush.msra.mxu0 0.0
      %413 = vmatpush.msra.mxu0 %v382
      %414 = vmatpush.msra.mxu0 %v375
      %415 = vmatpush.msra.mxu0 %v368
      %416 = vmatpush.msra.mxu0 %v361
      %417 = vmatpush.msra.mxu0 %v354
      %418 = vmatpush.msra.mxu0 %v347
      %419 = vmatpush.msra.mxu0 %v340
      %420 = vmatpush.msra.mxu0 %v333
      %421 = vmatpush.msra.mxu0 %v326
      %422 = vmatmul.f32.gmra.mxu0 %v385
      %v423 = vpop.f32.mrf.mxu0
      %v424 = vadd.f32 %v404, %v423
      %425 = vdwg.mxu0
      %426 = vmatpush.msra.mxu0 %v320
      %427 = vmatpush.msra.mxu0 %v313
      %428 = vmatpush.msra.mxu0 %v306
      %429 = vmatpush.msra.mxu0 %v213
      %430 = vmatpush.msra.mxu0 %v298
      %431 = vmatpush.msra.mxu0 %v291
      %432 = vmatpush.msra.mxu0 %v284
      %433 = vmatpush.msra.mxu0 %v277
      %434 = vmatpush.msra.mxu0 %v270
      %435 = vmatpush.msra.mxu0 %v263
      %436 = vmatpush.msra.mxu0 %v256
      %437 = vmatpush.msra.mxu0 %v249
      %438 = vmatpush.msra.mxu0 %v242
      %439 = vmatpush.msra.mxu0 %v235
      %440 = vmatpush.msra.mxu0 %v228
      %441 = vmatpush.msra.mxu0 %v221
      %442 = vmatmul.f32.gmra.mxu0 %v384
      %v443 = vpop.f32.mrf.mxu0
      %v444 = vadd.f32 0.0, %v443
      %445 = vdwg.mxu0
      %446 = vmatpush.msra.mxu0 0.0
      %447 = vmatpush.msra.mxu0 0.0
      %448 = vmatpush.msra.mxu0 0.0
      %449 = vmatpush.msra.mxu0 0.0
      %450 = vmatpush.msra.mxu0 0.0
      %451 = vmatpush.msra.mxu0 0.0
      %452 = vmatpush.msra.mxu0 0.0
      %453 = vmatpush.msra.mxu0 %v383
      %454 = vmatpush.msra.mxu0 %v376
      %455 = vmatpush.msra.mxu0 %v369
      %456 = vmatpush.msra.mxu0 %v362
      %457 = vmatpush.msra.mxu0 %v355
      %458 = vmatpush.msra.mxu0 %v348
      %459 = vmatpush.msra.mxu0 %v341
      %460 = vmatpush.msra.mxu0 %v334
      %461 = vmatpush.msra.mxu0 %v327
      %462 = vmatmul.f32.gmra.mxu0 %v385
      %v463 = vpop.f32.mrf.mxu0
      %v464 = vadd.f32 %v444, %v463
      %465 = vdwg.mxu0
      %v467 = vperm.slane %v209, 0
      %v468 = vperm.slane %v209, 1
      %v471 = vmul.f32 %v424, %v467
      %v472 = vmul.f32 %v464, %v468
      %473 = vst [vmem:[%s204] sm:$0xff] %v471
      %474 = vst [vmem:[%s204 + $0x8] sm:$0xff] %v472
      %vm475 = vcmp.lt.s32.totalorder %v211, 2
      %v476 = vsel %vm475, 1, 0
      %vm477 = vcmp.eq.s32.totalorder %v476, 1
      %v478 = vsel %vm477, %v471, -inf
      %v479 = vsel %vm477, %v472, -inf
      %v480 = vmax.f32 %v478, %v479
      %481 = vmax.xlane.f32.xlu0 %v480
      %v482 = vpop.xlane.xlu0 %481
      %v483 = vrot.slane %v482, 4
      %v484 = vmax.f32 %v482, %v483
      %v485 = vrot.slane %v484, 2
      %v486 = vmax.f32 %v484, %v485
      %v487 = vrot.slane %v486, 1
      %v488 = vmax.f32 %v486, %v487
      %s489 = vtos %v488
      %v490 = vstv %s489
      %491 = vst [vmem:[%s208] sm:$0xff] %v490
      %p492 = scmp.lt.s32.totalorder %s16, 1
      %s493 = scalar_select %p492, %s16, 1
      %s494 = smul.addr %s493, 2
      %s495 = smul.addr %s494, 8
      %s496 = scalar_lea.vmem %s3, %s495
      %p497 = scmp.lt.s32.totalorder %s16, 1
      %s498 = scalar_select %p497, %s16, 1
      %s499 = smul.addr %s498, 8
      %s500 = scalar_lea.vmem %s4, %s499
      // Predicated region
      $region33: #{siamese_forward.1} parent=31 // pred_check
        %p501 = pneg %p102
      $region34: #{siamese_forward.1} parent=31 // pred_check_branch
        %503 = sbr.rel (%p501) target = $region36
      $region35: #{siamese_forward.1} parent=31 // pred_region
        _
      $region36: #{siamese_forward.1} parent=31 // pred_fallthru
        _
      // Predicated region
      $region37: #{siamese_forward.1} parent=31 // pred_check
        %p504 = pneg %p128
      $region38: #{siamese_forward.1} parent=31 // pred_check_branch
        %506 = sbr.rel (%p504) target = $region40
      $region39: #{siamese_forward.1} parent=31 // pred_region
        _
      $region40: #{siamese_forward.1} parent=31 // pred_fallthru
        _
    $region32: #{siamese_forward.1} parent=5 // pred_fallthru
      _
    %p507 = scmp.le.s32.totalorder 2, %s11
    // Predicated region
    $region41: #{siamese_forward.1} parent=5 // pred_check
      %p508 = pneg %p507
    $region42: #{siamese_forward.1} parent=5 // pred_check_branch
      %510 = sbr.rel (%p508) target = $region44
    $region43: #{siamese_forward.1} parent=5 // pred_region
      %s511 = ssub.s32 %s11, 2
      // Predicated region
      $region45: #{siamese_forward.1} parent=43 // pred_check
        %p512 = pneg %p108
      $region46: #{siamese_forward.1} parent=43 // pred_check_branch
        %514 = sbr.rel (%p512) target = $region48
      $region47: #{siamese_forward.1} parent=43 // pred_region
        %p515 = scmp.lt.s32.totalorder %s17, 1
        %s516 = scalar_select %p515, %s17, 1
        %s517 = smul.addr %s516, 2
        %s518 = smul.addr %s517, 8
        %s519 = scalar_lea.vmem %s3, %s518
      $region48: #{siamese_forward.1} parent=43 // pred_fallthru
        _
      // Predicated region
      $region49: #{siamese_forward.1} parent=43 // pred_check
        %p520 = pneg %p134
      $region50: #{siamese_forward.1} parent=43 // pred_check_branch
        %522 = sbr.rel (%p520) target = $region52
      $region51: #{siamese_forward.1} parent=43 // pred_region
        %p523 = scmp.lt.s32.totalorder %s17, 1
        %s524 = scalar_select %p523, %s17, 1
        %s525 = smul.addr %s524, 8
        %s526 = scalar_lea.vmem %s4, %s525
      $region52: #{siamese_forward.1} parent=43 // pred_fallthru
        _
    $region44: #{siamese_forward.1} parent=5 // pred_fallthru
      _
  $region6: #{siamese_forward.1} parent=0 // loop_footer
    %s15 = sadd.s32 1, %s11
  $region7: #{siamese_forward.1} parent=0 // loop_footer_branch
    %10 = sbr.rel target = $region3
  $region8: #{siamese_forward.1} parent=0 // loop_exit
    _

</llo_original>
